<compile_context>
chip_gen: v6e
topology: v6e:2x2x1
jax: 0.10.0
libtpu: 0.0.40
codegen_flags: <defaults>
</compile_context>

<pallas_src>
import functools

import jax
import jax.numpy as jnp
from jax import lax
from jax.experimental import pallas as pl
from jax.experimental.pallas import tpu as pltpu

LANES = 128
SUB_ROWS = 512         # in-kernel compute chunk: (512, 128) f32 temps = 256 KiB each
MAX_ROW_TILE = 8192    # DMA block: (8192, 128) f32 = 4 MiB per input per grid step


def _cdiv(a, b):
    return -(-a // b)


def _focal_elem(o, l, *, gamma, pos_weight, neg_weight):
    """Elementwise focal loss in f32.  Matches the PyTorch reference:
    -(l*pw*(1-o)^g*log(o) + (1-l)*nw*o^g*log(1-o)) with clamp(o, 1e-12, 1-1e-12).

    Note: 1 - 1e-12 rounds to exactly 1.0 in f32, so the upper clamp is a no-op
    — identical to the f32 PyTorch reference (inputs of exactly 0.0 / 1.0 give
    NaN in both implementations).
    """
    o = jnp.clip(o.astype(jnp.float32), jnp.float32(1e-12), jnp.float32(1.0 - 1e-12))
    l = l.astype(jnp.float32)
    one_m_o = jnp.float32(1.0) - o
    log_o = jnp.log(o)
    log_om = jnp.log(one_m_o)

    g = float(gamma)
    if g == int(g):
        # Pure VPU multiplies; no extra EUP work.
        pow_om = lax.integer_pow(one_m_o, int(g))
        pow_o = lax.integer_pow(o, int(g))
    else:
        # Reuse the logs already needed by the loss: 2 extra EUP ops/elem
        # instead of jnp.power's log+exp per pow (keeps v7x HBM-bound).
        pow_om = jnp.exp(jnp.float32(g) * log_om)
        pow_o = jnp.exp(jnp.float32(g) * log_o)

    pos = l * jnp.float32(pos_weight) * pow_om * log_o
    neg = (jnp.float32(1.0) - l) * jnp.float32(neg_weight) * pow_o * log_om
    return -(pos + neg)


def _focal_loss_kernel(o_ref, l_ref, part_ref, *, gamma, pos_weight, neg_weight,
                       valid_rows, row_tile, sub_rows, tiles_per_shard,
                       full_tiles, needs_mask):
    s = pl.program_id(0)                      # shard (parallel; megacore on v7x)
    t = pl.program_id(1)                      # tile within shard (accumulation axis)
    tile_idx = s * tiles_per_shard + t        # global tile index (unclamped)
    tile_row0 = tile_idx * row_tile           # global first row of this tile (int32 ok)

    @pl.when(t == 0)
    def _init():
        part_ref[...] = jnp.zeros_like(part_ref)

    n_sub = row_tile // sub_rows

    def accumulate(masked):
        if masked:
            # Hoisted out of the chunk loop (broadcast_in_dim is not CSE'd).
            sub_iota = lax.broadcasted_iota(jnp.int32, (sub_rows, LANES), 0)

        def chunk(c):
            if isinstance(c, int):
                r0 = c * sub_rows
            else:
                r0 = pl.multiple_of(c * sub_rows, sub_rows)
            loss = _focal_elem(o_ref[pl.ds(r0, sub_rows), :],
                               l_ref[pl.ds(r0, sub_rows), :],
                               gamma=gamma, pos_weight=pos_weight,
                               neg_weight=neg_weight)
            if masked:
                # Row-level validity mask: covers the partial last tile and the
                # megacore overflow tile.  Garbage in the partially-DMA'd block
                # region (even NaN) is selected away before the sum.
                grow = tile_row0 + r0 + sub_iota
                loss = jnp.where(grow < valid_rows, loss, jnp.float32(0.0))
            # Partial-reduce (sub_rows, 128) -> (8, 128) with elementwise adds
            # only (VPU); the single cross-lane reduce happens in the wrapper.
            part_ref[...] += loss.reshape(sub_rows // 8, 8, LANES).sum(axis=0)

        if n_sub == 1:
            chunk(0)
        else:
            def body(c, carry):
                chunk(c)
                return carry
            lax.fori_loop(0, n_sub, body, 0)

    if not needs_mask:
        accumulate(False)
    elif full_tiles == 0:
        accumulate(True)
    else:
        @pl.when(tile_idx < full_tiles)
        def _full_tiles():
            accumulate(False)

        @pl.when(tile_idx >= full_tiles)
        def _edge_tiles():
            accumulate(True)


def focal_loss(output, label, *, gamma=2, weight=None):
    """Pallas TPU focal loss.  Returns a scalar f32 (mean over all elements)."""
    pos_w = float(weight[0]) if weight is not None else 1.0
    neg_w = float(weight[1]) if weight is not None else 1.0

    assert output.shape == label.shape, (output.shape, label.shape)
    total = output.size
    assert total > 0

    out_flat = output.reshape(-1)
    lab_flat = label.reshape(-1)

    # dtype-aware sublane alignment: 8 rows for 4-byte, 16 for 2-byte, 32 for
    # 1-byte elements, so bf16/f16 inputs can be fed directly (half the HBM
    # bytes) with legal block shapes.
    min_isz = min(output.dtype.itemsize, label.dtype.itemsize)
    align = max(8, 32 // max(1, min_isz))

    rows = total // LANES
    rows_kernel = (rows // align) * align     # rows handled by the kernel
    kernel_elems = rows_kernel * LANES

    if rows_kernel == 0:
        # Tiny input (< align*128 elements): not worth a kernel launch.
        loss = _focal_elem(out_flat, lab_flat, gamma=gamma,
                           pos_weight=pos_w, neg_weight=neg_w)
        return jnp.sum(loss) / jnp.float32(total)

    if kernel_elems != total:
        # Ragged tail (< align*128 + 128 elements): a few lines of plain jnp,
        # added to the kernel's partial sums — no full-tensor pad pass.
        tail_loss = _focal_elem(out_flat[kernel_elems:], lab_flat[kernel_elems:],
                                gamma=gamma, pos_weight=pos_w, neg_weight=neg_w)
        tail_sum = jnp.sum(tail_loss)
        out2d = out_flat[:kernel_elems].reshape(rows_kernel, LANES)
        lab2d = lab_flat[:kernel_elems].reshape(rows_kernel, LANES)
    else:
        tail_sum = jnp.float32(0.0)
        out2d = out_flat.reshape(rows_kernel, LANES)     # pure reshape, no copy
        lab2d = lab_flat.reshape(rows_kernel, LANES)

    # Tiling: compute chunk (sub_rows) and DMA block (row_tile).  row_tile is a
    # multiple of sub_rows, never exceeds rows_kernel, and prefers >= 2 tiles so
    # both v7x TensorCores get work.
    sub_rows = min(SUB_ROWS, rows_kernel)                 # multiple of align (>= 8)
    row_tile = min(MAX_ROW_TILE,
                   max(sub_rows, ((rows_kernel // 2) // sub_rows) * sub_rows))
    num_tiles = _cdiv(rows_kernel, row_tile)
    full_tiles = rows_kernel // row_tile                  # tiles with no invalid rows
    num_shards = 2 if num_tiles >= 2 else 1               # unconditional megacore split
    tiles_per_shard = _cdiv(num_tiles, num_shards)
    grid_tiles = num_shards * tiles_per_shard
    needs_mask = grid_tiles > full_tiles                  # partial or overflow tile exists
    last_block = num_tiles - 1

    def in_index(s, t):
        # Clamp so the (possible) overflow tile of an uneven megacore split never
        # DMAs out of bounds; its contribution is masked to zero in the kernel.
        return (jnp.minimum(s * tiles_per_shard + t, last_block), 0)

    kernel = functools.partial(
        _focal_loss_kernel,
        gamma=gamma, pos_weight=pos_w, neg_weight=neg_w,
        valid_rows=rows_kernel, row_tile=row_tile, sub_rows=sub_rows,
        tiles_per_shard=tiles_per_shard, full_tiles=full_tiles,
        needs_mask=needs_mask)

    partials = pl.pallas_call(
        kernel,
        out_shape=jax.ShapeDtypeStruct((num_shards * 8, LANES), jnp.float32),
        grid_spec=pltpu.PrefetchScalarGridSpec(
            num_scalar_prefetch=0,
            grid=(num_shards, tiles_per_shard),
            in_specs=[pl.BlockSpec((row_tile, LANES), in_index),
                      pl.BlockSpec((row_tile, LANES), in_index)],
            out_specs=pl.BlockSpec((8, LANES), lambda s, t: (s, 0)),
        ),
        compiler_params=pltpu.CompilerParams(
            dimension_semantics=("parallel", "arbitrary"),
            vmem_limit_bytes=32 * 1024 * 1024),
    )(out2d, lab2d)

    # Single tiny final reduce (num_shards * 8 * 128 values) + mean divide.
    return (jnp.sum(partials) + tail_sum) / jnp.float32(total)


def focal_loss_ref(output, label, *, gamma=2, weight=None):
    pos_w = float(weight[0]) if weight is not None else 1.0
    neg_w = float(weight[1]) if weight is not None else 1.0
    o = jnp.clip(output.astype(jnp.float32), 1e-12, 1.0 - 1e-12)
    l = label.astype(jnp.float32)
    loss = -(l * pos_w * jnp.power(1.0 - o, gamma) * jnp.log(o)
             + (1.0 - l) * neg_w * jnp.power(o, gamma) * jnp.log(1.0 - o))
    return jnp.mean(loss)


if __name__ == "__main__":
    key = jax.random.PRNGKey(0)
    weight = (1.5, 0.75)
    gamma = 2

    cases = [
        (2, 4, 16, 16),      # divisible path, single tile
        (3, 5, 7, 11),       # ragged total: prefix through kernel + jnp tail
        (4, 4, 128, 128),    # multi-chunk fori_loop + 2-shard split, no mask
        (3, 4, 128, 128),    # odd tile count: clamped overflow tile + masked path
    ]

    for i, shape in enumerate(cases):
        k1, k2, key = jax.random.split(key, 3)
        output = jax.nn.sigmoid(jax.random.normal(k1, shape, jnp.float32))  # probs in (0,1)
        label = (jax.random.uniform(k2, shape) > 0.5).astype(jnp.float32)   # binary labels

        loss = focal_loss(output, label, gamma=gamma, weight=weight)
        loss = jax.block_until_ready(loss)
        ref = focal_loss_ref(output, label, gamma=gamma, weight=weight)
        assert jnp.allclose(loss, ref, rtol=1e-5, atol=1e-6), (i, shape, loss, ref)

    print("KERNEL_OK")
</pallas_src>

<mosaic_0001>
module attributes {stable_mosaic.version = 11 : i64} {
  func.func @_focal_loss_kernel(%arg0: i32, %arg1: i32, %arg2: memref<16x128xf32, #tpu.memory_space<vmem>>, %arg3: memref<16x128xf32, #tpu.memory_space<vmem>>, %arg4: memref<8x128xf32, #tpu.memory_space<vmem>>) attributes {dimension_semantics = [#tpu.dimension_semantics<parallel>, #tpu.dimension_semantics<arbitrary>], iteration_bounds = array<i64: 1, 1>, scalar_prefetch = 0 : i64, scratch_operands = 0 : i64, tpu.core_type = #tpu.core_type<tc>, window_params = [{transform_indices = @transform_0, window_bounds = array<i64: 16, 128>}, {transform_indices = @transform_1, window_bounds = array<i64: 16, 128>}, {transform_indices = @transform_2, window_bounds = array<i64: 8, 128>}]} {
    %c0_i32 = arith.constant 0 : i32
    %0 = arith.cmpi eq, %arg1, %c0_i32 : i32
    %1 = arith.extui %0 : i1 to i32
    %c0_i32_0 = arith.constant 0 : i32
    %2 = arith.cmpi ne, %1, %c0_i32_0 : i32
    scf.if %2 {
      %cst_15 = arith.constant 0.000000e+00 : f32
      %33 = vector.broadcast %cst_15 : f32 to vector<8x128xf32>
      %c0_16 = arith.constant 0 : index
      %c0_17 = arith.constant 0 : index
      %34 = vector.load %arg4[%c0_16, %c0_17] : memref<8x128xf32, #tpu.memory_space<vmem>>, vector<8x128xf32>
      tpu.vector_store %arg4[%c0_16, %c0_17], %33 {strides = array<i32>} : memref<8x128xf32, #tpu.memory_space<vmem>>, vector<8x128xf32>,
    } else {
    }
    %c0 = arith.constant 0 : index
    %c0_1 = arith.constant 0 : index
    %3 = vector.load %arg2[%c0, %c0_1] : memref<16x128xf32, #tpu.memory_space<vmem>>, vector<16x128xf32>
    %c0_2 = arith.constant 0 : index
    %c0_3 = arith.constant 0 : index
    %4 = vector.load %arg3[%c0_2, %c0_3] : memref<16x128xf32, #tpu.memory_space<vmem>>, vector<16x128xf32>
    %cst = arith.constant 9.99999996E-13 : f32
    %cst_4 = arith.constant 1.000000e+00 : f32
    %5 = vector.broadcast %cst : f32 to vector<16x128xf32>
    %6 = arith.maximumf %5, %3 : vector<16x128xf32>
    %7 = vector.broadcast %cst_4 : f32 to vector<16x128xf32>
    %8 = arith.minimumf %7, %6 : vector<16x128xf32>
    %cst_5 = arith.constant 1.000000e+00 : f32
    %9 = vector.broadcast %cst_5 : f32 to vector<16x128xf32>
    %10 = arith.subf %9, %8 : vector<16x128xf32>
    %11 = math.log %8 : vector<16x128xf32>
    %12 = math.log %10 : vector<16x128xf32>
    %13 = arith.mulf %10, %10 : vector<16x128xf32>
    %14 = arith.mulf %8, %8 : vector<16x128xf32>
    %cst_6 = arith.constant 1.500000e+00 : f32
    %15 = vector.broadcast %cst_6 : f32 to vector<16x128xf32>
    %16 = arith.mulf %4, %15 : vector<16x128xf32>
    %17 = arith.mulf %16, %13 : vector<16x128xf32>
    %18 = arith.mulf %17, %11 : vector<16x128xf32>
    %cst_7 = arith.constant 1.000000e+00 : f32
    %19 = vector.broadcast %cst_7 : f32 to vector<16x128xf32>
    %20 = arith.subf %19, %4 : vector<16x128xf32>
    %cst_8 = arith.constant 7.500000e-01 : f32
    %21 = vector.broadcast %cst_8 : f32 to vector<16x128xf32>
    %22 = arith.mulf %20, %21 : vector<16x128xf32>
    %23 = arith.mulf %22, %14 : vector<16x128xf32>
    %24 = arith.mulf %23, %12 : vector<16x128xf32>
    %25 = arith.addf %18, %24 : vector<16x128xf32>
    %cst_9 = arith.constant 0.000000e+00 : f32
    %26 = vector.broadcast %cst_9 : f32 to vector<16x128xf32>
    %27 = arith.subf %26, %25 : vector<16x128xf32>
    %c0_10 = arith.constant 0 : index
    %c0_11 = arith.constant 0 : index
    %28 = vector.load %arg4[%c0_10, %c0_11] : memref<8x128xf32, #tpu.memory_space<vmem>>, vector<8x128xf32>
    %29 = vector.shape_cast %27 : vector<16x128xf32> to vector<2x8x128xf32>
    %cst_12 = arith.constant dense<0.000000e+00> : vector<8x128xf32>
    %30 = vector.multi_reduction <add>, %29, %cst_12 [0] : vector<2x8x128xf32> to vector<8x128xf32>
    %31 = arith.addf %28, %30 : vector<8x128xf32>
    %c0_13 = arith.constant 0 : index
    %c0_14 = arith.constant 0 : index
    %32 = vector.load %arg4[%c0_13, %c0_14] : memref<8x128xf32, #tpu.memory_space<vmem>>, vector<8x128xf32>
    tpu.vector_store %arg4[%c0_13, %c0_14], %31 {strides = array<i32>} : memref<8x128xf32, #tpu.memory_space<vmem>>, vector<8x128xf32>,
    return
  }
  func.func @transform_0(%arg0: i32, %arg1: i32) -> (i32, i32) {
    %c1_i32 = arith.constant 1 : i32
    %0 = arith.muli %arg0, %c1_i32 : i32
    %1 = arith.addi %0, %arg1 : i32
    %c0_i32 = arith.constant 0 : i32
    %2 = arith.minsi %1, %c0_i32 : i32
    %c0_i32_0 = arith.constant 0 : i32
    %c0_i32_1 = arith.constant 0 : i32
    return %2, %c0_i32_0 : i32, i32
  }
  func.func @transform_1(%arg0: i32, %arg1: i32) -> (i32, i32) {
    %c1_i32 = arith.constant 1 : i32
    %0 = arith.muli %arg0, %c1_i32 : i32
    %1 = arith.addi %0, %arg1 : i32
    %c0_i32 = arith.constant 0 : i32
    %2 = arith.minsi %1, %c0_i32 : i32
    %c0_i32_0 = arith.constant 0 : i32
    %c0_i32_1 = arith.constant 0 : i32
    return %2, %c0_i32_0 : i32, i32
  }
  func.func @transform_2(%arg0: i32, %arg1: i32) -> (i32, i32) {
    %c0_i32 = arith.constant 0 : i32
    %c0_i32_0 = arith.constant 0 : i32
    return %arg0, %c0_i32 : i32, i32
  }
}

</mosaic_0001>

<llo_original>
// kernel: tpu_custom_call.1
$region0: #{tpu_custom_call.1}
  #allocation0 [shape = 'u32[]', space=smem, size = 0x4, offset = 0x4, fixed_abs, tag = 'smem constant byte address 0x4 - core index']
  #allocation1 [shape = 'u32[144,128]{1,0:T(1,128)}', space=vmem, size = 0x12000, scoped, tag = 'internal scratch']
  %s0 = inlined_call_operand.hbm [shape: f32[16,128], index: 0, kind: input, shape index: {}]
  %s1 = inlined_call_operand.hbm [shape: f32[16,128], index: 1, kind: input, shape index: {}]
  %s2 = inlined_call_operand.hbm [shape: f32[8,128], index: 2, kind: output, shape index: {}]
  %s3 = sld [smem:[#allocation0]]
  $region30: #{tpu_custom_call.1} parent=0
    _
  %s5 = ssub.s32 1, %s3
  %s6 = scalar_select 0, %s5, %s3
  $region1: #{tpu_custom_call.1} parent=0
    #allocation2 [shape = 'u8[8192]{0}', space=vmem, size = 0x2000, scoped, tag = 'input window, operand 0, single buffered']
    #allocation3 [shape = 's32[1]{0}', space=sflag, size = 0x4, scoped, tag = 'scoped memory for tpu_custom_call.1']
    #allocation4 [shape = 's32[1]{0}', space=sflag, size = 0x4, scoped, tag = 'scoped memory for tpu_custom_call.1']
    #allocation5 [shape = 'u8[8192]{0}', space=vmem, size = 0x2000, scoped, tag = 'input window, operand 1, single buffered']
    #allocation6 [shape = 's32[1]{0}', space=sflag, size = 0x4, scoped, tag = 'scoped memory for tpu_custom_call.1']
    #allocation7 [shape = 'u8[4096]{0}', space=vmem, size = 0x1000, scoped, tag = 'output window, operand 0, single buffered']
    %7 = vsyncpa [#allocation3], 0
    %8 = vsyncpa [#allocation6], 0
    %9 = vsyncpa [#allocation4], 0
    // Predicated region
    $region2: #{tpu_custom_call.1} parent=1 // pred_check
      _
    $region3: #{tpu_custom_call.1} parent=1 // pred_check_branch
      %11 = sbr.rel (0) target = $region5
    $region4: #{tpu_custom_call.1} parent=1 // pred_region
      %s12 = sadd.s32 0, 0
      %p13 = scmp.lt.s32.totalorder %s12, 0
      %s14 = scalar_select %p13, %s12, 0
      %s15 = smul.u32 2, %s14
      %s17 = ssub.s32 256, 256
      %18 = vsyncadd [#allocation3], %s17
      %s19 = smul.addr %s15, 128
      %s20 = scalar_lea.hbm %s0, %s19
      %s21 = sshll.u32 [#allocation2], 4
      %s22 = int_to_ptr.vmem [resolvable:$true] %s21
      %27 = dma.hbm_to_vmem [thread:$0]  %s20, 256, %s22, [#allocation3], 128, 128, 8
    $region5: #{tpu_custom_call.1} parent=1 // pred_fallthru
      _
    // Predicated region
    $region6: #{tpu_custom_call.1} parent=1 // pred_check
      _
    $region7: #{tpu_custom_call.1} parent=1 // pred_check_branch
      %29 = sbr.rel (0) target = $region9
    $region8: #{tpu_custom_call.1} parent=1 // pred_region
      %s30 = sadd.s32 0, 0
      %p31 = scmp.lt.s32.totalorder %s30, 0
      %s32 = scalar_select %p31, %s30, 0
      %s33 = smul.u32 2, %s32
      %s35 = ssub.s32 256, 256
      %36 = vsyncadd [#allocation6], %s35
      %s37 = smul.addr %s33, 128
      %s38 = scalar_lea.hbm %s1, %s37
      %s39 = sshll.u32 [#allocation5], 4
      %s40 = int_to_ptr.vmem [resolvable:$true] %s39
      %45 = dma.hbm_to_vmem [thread:$0]  %s38, 256, %s40, [#allocation6], 128, 128, 8
    $region9: #{tpu_custom_call.1} parent=1 // pred_fallthru
      _
    // Predicated region
    $region10: #{tpu_custom_call.1} parent=1 // pred_check
      _
    $region11: #{tpu_custom_call.1} parent=1 // pred_check_branch
      %47 = sbr.rel (0) target = $region13
    $region12: #{tpu_custom_call.1} parent=1 // pred_region
      %48 = dma.done [#allocation3], 256
    $region13: #{tpu_custom_call.1} parent=1 // pred_fallthru
      _
    // Predicated region
    $region14: #{tpu_custom_call.1} parent=1 // pred_check
      _
    $region15: #{tpu_custom_call.1} parent=1 // pred_check_branch
      %50 = sbr.rel (0) target = $region17
    $region16: #{tpu_custom_call.1} parent=1 // pred_region
      %51 = dma.done [#allocation6], 256
    $region17: #{tpu_custom_call.1} parent=1 // pred_fallthru
      _
    %s52 = sadd.s32 0, 0
    %p53 = scmp.lt.s32.totalorder %s52, 0
    %s54 = scalar_select %p53, %s52, 0
    %s55 = smul.u32 2, %s54
    %s56 = sadd.s32 0, 0
    %p57 = scmp.lt.s32.totalorder %s56, 0
    %s58 = scalar_select %p57, %s56, 0
    %s59 = smul.u32 2, %s58
    %p60 = scmp.eq.s32.totalorder 0, 0
    // Predicated region
    $region18: #{tpu_custom_call.1} parent=1 // pred_check
      %p61 = pneg %p60
    $region19: #{tpu_custom_call.1} parent=1 // pred_check_branch
      %63 = sbr.rel (%p61) target = $region21
    $region20: #{tpu_custom_call.1} parent=1 // pred_region
      %64 = vst [vmem:[#allocation7] sm:$0xff] 0.0
    $region21: #{tpu_custom_call.1} parent=1 // pred_fallthru
      _
    %v65 = vld [vmem:[#allocation2] sm:$0xff]
    %v66 = vld [vmem:[#allocation2 + $0x8] sm:$0xff]
    %v67 = vld [vmem:[#allocation5] sm:$0xff]
    %v68 = vld [vmem:[#allocation5 + $0x8] sm:$0xff]
    %v69 = vmax.f32 %v65, 1e-12
    %v70 = vmax.f32 %v66, 1e-12
    %v71 = vmin.f32 %v69, 1.0
    %v72 = vmin.f32 %v70, 1.0
    %v73 = vsub.f32 1.0, %v71
    %v74 = vsub.f32 1.0, %v72
    %v75 = vlog2.pop %v71
    %v76 = vmul.f32 %v75, 0.6931472
    %v77 = vlog2.pop %v72
    %v78 = vmul.f32 %v77, 0.6931472
    %v79 = vlog2.pop %v73
    %v80 = vmul.f32 %v79, 0.6931472
    %v81 = vlog2.pop %v74
    %v82 = vmul.f32 %v81, 0.6931472
    %v83 = vmul.f32 %v73, %v73
    %v84 = vmul.f32 %v74, %v74
    %v85 = vmul.f32 %v71, %v71
    %v86 = vmul.f32 %v72, %v72
    %v87 = vmul.f32 %v67, 1.5
    %v88 = vmul.f32 %v68, 1.5
    %v89 = vmul.f32 %v87, %v83
    %v90 = vmul.f32 %v88, %v84
    %v91 = vmul.f32 %v89, %v76
    %v92 = vmul.f32 %v90, %v78
    %v93 = vsub.f32 1.0, %v67
    %v94 = vsub.f32 1.0, %v68
    %v95 = vmul.f32 %v93, 0.75
    %v96 = vmul.f32 %v94, 0.75
    %v97 = vmul.f32 %v95, %v85
    %v98 = vmul.f32 %v96, %v86
    %v99 = vmul.f32 %v97, %v80
    %v100 = vmul.f32 %v98, %v82
    %v101 = vadd.f32 %v91, %v99
    %v102 = vadd.f32 %v92, %v100
    %v103 = vsub.f32 0.0, %v101
    %v104 = vsub.f32 0.0, %v102
    %v105 = vld [vmem:[#allocation7] sm:$0xff]
    %v106 = vadd.f32 %v103, %v104
    %v107 = vadd.f32 %v105, %v106
    %108 = vst [vmem:[#allocation7] sm:$0xff] %v107
    // Predicated region
    $region22: #{tpu_custom_call.1} parent=1 // pred_check
      _
    $region23: #{tpu_custom_call.1} parent=1 // pred_check_branch
      %110 = sbr.rel (0) target = $region25
    $region24: #{tpu_custom_call.1} parent=1 // pred_region
      %s112 = ssub.s32 128, 128
      %113 = vsyncadd [#allocation4], %s112
      %s115 = sshll.u32 [#allocation7], 4
      %s116 = int_to_ptr.vmem [resolvable:$true] %s115
      %118 = dma.vmem_to_hbm [thread:$0]  %s116, 128, %s2, [#allocation4]
    $region25: #{tpu_custom_call.1} parent=1 // pred_fallthru
      _
    // Predicated region
    $region26: #{tpu_custom_call.1} parent=1 // pred_check
      _
    $region27: #{tpu_custom_call.1} parent=1 // pred_check_branch
      %120 = sbr.rel (0) target = $region29
    $region28: #{tpu_custom_call.1} parent=1 // pred_region
      %121 = dma.done [#allocation4], 128
    $region29: #{tpu_custom_call.1} parent=1 // pred_fallthru
      _
    %122 = vsyncpa [#allocation3], 1
    %123 = vsyncpa [#allocation6], 1
    %124 = vsyncpa [#allocation4], 1

</llo_original>
